<compile_context>
chip_gen: v7x
topology: tpu7x:2x2x1
jax: 0.10.0
libtpu: 0.0.40
codegen_flags: <defaults>
</compile_context>

<pallas_src>
import functools

import jax
import jax.numpy as jnp
from jax.experimental import pallas as pl
from jax.experimental.pallas import tpu as pltpu

IN_F = 9
HID_F = 4
OUT_F = 2


def classify_kernel(x_ref, w1_ref, b1_ref, w2_ref, b2_ref, o_ref):
    # x_ref : [IN_F, TILE_B]  f32 VMEM  (feature-major: batch on the lane axis)
    # w1_ref: [HID_F, IN_F]   f32 SMEM    b1_ref: [HID_F] f32 SMEM
    # w2_ref: [OUT_F, HID_F]  f32 SMEM    b2_ref: [OUT_F] f32 SMEM
    # o_ref : [OUT_F, TILE_B] f32 VMEM

    # ---- layer 1: Linear(9 -> 4) + ReLU, unrolled scalar-broadcast FMAs (VPU) ----
    h = [None] * HID_F
    for k in range(IN_F):
        xk = x_ref[k:k + 1, :]                        # [1, TILE_B] lane-dense row load
        for j in range(HID_F):
            term = w1_ref[j, k] * xk
            h[j] = term if h[j] is None else h[j] + term
    for j in range(HID_F):
        h[j] = jnp.maximum(h[j] + b1_ref[j], 0.0)     # bias + ReLU

    # ---- layer 2: Linear(4 -> 2), same unrolled FMA scheme ----
    z = [None] * OUT_F
    for c in range(OUT_F):
        acc = w2_ref[c, 0] * h[0]
        for j in range(1, HID_F):
            acc = acc + w2_ref[c, j] * h[j]
        z[c] = acc + b2_ref[c]

    # ---- 2-class softmax == sigmoid of the logit difference (no XLU reductions) ----
    d = z[1] - z[0]                                   # [1, TILE_B]
    p1 = 1.0 / (1.0 + jnp.exp(-d))                    # stable: exp overflow -> p1 == 0
    p0 = 1.0 - p1
    o_ref[...] = jnp.concatenate([p0, p1], axis=0)    # single [2, TILE_B] store


def _round_up(n, m):
    return ((n + m - 1) // m) * m


@functools.partial(jax.jit, static_argnames=("tile_b",))
def classify_forward(x, w1, b1, w2, b2, *, tile_b=512):
    """x: [B, 9]. w1: [4, 9], b1: [4], w2: [2, 4], b2: [2] (torch nn.Linear layout)."""
    x = jnp.asarray(x, jnp.float32)
    B = x.shape[0]

    # Lane tile: multiple of 128; don't over-pad tiny batches, cap at `tile_b`.
    # tile_b=512 => x tile ~18 KiB, out tile ~4 KiB; double-buffered this is ~50 KiB
    # of VMEM, safe even under v7x's 64 MiB physical / 32 MiB default scoped limit.
    tb = min(tile_b, _round_up(B, 128))
    b_pad = _round_up(B, tb)

    # Feature-major, zero-padded along batch; padded rows compute garbage probabilities
    # that are explicitly sliced off below.
    x_fm = jnp.pad(x, ((0, b_pad - B), (0, 0))).T          # [9, B_pad]

    w1f = jnp.asarray(w1, jnp.float32)                     # [4, 9]
    b1f = jnp.asarray(b1, jnp.float32)                     # [4]
    w2f = jnp.asarray(w2, jnp.float32)                     # [2, 4]
    b2f = jnp.asarray(b2, jnp.float32)                     # [2]

    smem = pl.BlockSpec(memory_space=pltpu.MemorySpace.SMEM)
    out_fm = pl.pallas_call(
        classify_kernel,
        out_shape=jax.ShapeDtypeStruct((OUT_F, b_pad), jnp.float32),
        grid=(b_pad // tb,),
        in_specs=[
            pl.BlockSpec((IN_F, tb), lambda i: (0, i)),    # pipelined batch tiles
            smem, smem, smem, smem,                        # tiny params resident in SMEM
        ],
        out_specs=pl.BlockSpec((OUT_F, tb), lambda i: (0, i)),
        compiler_params=pltpu.CompilerParams(
            dimension_semantics=("parallel",),             # shard batch across TCs (v7x)
        ),
    )(x_fm, w1f, b1f, w2f, b2f)

    out = out_fm.T[:B]                                     # back to [B, 2], drop padding
    return jnp.squeeze(out)                                # torch .squeeze() semantics


if __name__ == "__main__":
    key = jax.random.PRNGKey(0)
    k_x, k_w1, k_b1, k_w2, k_b2 = jax.random.split(key, 5)

    B = 8
    x = jax.random.normal(k_x, (B, IN_F), dtype=jnp.float32)

    # Deterministic params mirroring nn.Linear default init: U(-1/sqrt(fan_in), +).
    bound1 = 1.0 / jnp.sqrt(float(IN_F))
    w1 = jax.random.uniform(k_w1, (HID_F, IN_F), jnp.float32, -bound1, bound1)
    b1 = jax.random.uniform(k_b1, (HID_F,), jnp.float32, -bound1, bound1)
    bound2 = 1.0 / jnp.sqrt(float(HID_F))
    w2 = jax.random.uniform(k_w2, (OUT_F, HID_F), jnp.float32, -bound2, bound2)
    b2 = jax.random.uniform(k_b2, (OUT_F,), jnp.float32, -bound2, bound2)

    out = classify_forward(x, w1, b1, w2, b2)
    out = jax.block_until_ready(out)

    # Pure-JAX reference (same math as the PyTorch eval forward).
    h_ref = jnp.maximum(x @ w1.T + b1, 0.0)
    z_ref = h_ref @ w2.T + b2
    ref = jnp.squeeze(jax.nn.softmax(z_ref, axis=-1))
    assert out.shape == (B, OUT_F), f"unexpected shape {out.shape}"
    assert jnp.allclose(out, ref, atol=1e-5), "mismatch vs reference"

    print("KERNEL_OK")
</pallas_src>

<mosaic_0001>
module attributes {stable_mosaic.version = 11 : i64} {
  func.func @classify_kernel(%arg0: i32, %arg1: memref<9x128xf32, #tpu.memory_space<vmem>>, %arg2: memref<4x9xf32, #tpu.memory_space<smem>>, %arg3: memref<4xf32, #tpu.memory_space<smem>>, %arg4: memref<2x4xf32, #tpu.memory_space<smem>>, %arg5: memref<2xf32, #tpu.memory_space<smem>>, %arg6: memref<2x128xf32, #tpu.memory_space<vmem>>) attributes {dimension_semantics = [#tpu.dimension_semantics<parallel>], iteration_bounds = array<i64: 1>, scalar_prefetch = 0 : i64, scratch_operands = 0 : i64, tpu.core_type = #tpu.core_type<tc>, window_params = [{transform_indices = @transform_0, window_bounds = array<i64: 9, 128>}, {transform_indices = @transform_1, window_bounds = array<i64: 4, 9>}, {transform_indices = @transform_2, window_bounds = array<i64: 4>}, {transform_indices = @transform_3, window_bounds = array<i64: 2, 4>}, {transform_indices = @transform_4, window_bounds = array<i64: 2>}, {transform_indices = @transform_5, window_bounds = array<i64: 2, 128>}]} {
    %c0 = arith.constant 0 : index
    %c0_0 = arith.constant 0 : index
    %0 = vector.load %arg1[%c0, %c0_0] : memref<9x128xf32, #tpu.memory_space<vmem>>, vector<1x128xf32>
    %c0_1 = arith.constant 0 : index
    %c0_2 = arith.constant 0 : index
    %1 = memref.load %arg2[%c0_1, %c0_2] : memref<4x9xf32, #tpu.memory_space<smem>>
    %2 = vector.broadcast %1 : f32 to vector<1x128xf32>
    %3 = arith.mulf %2, %0 : vector<1x128xf32>
    %c1 = arith.constant 1 : index
    %c0_3 = arith.constant 0 : index
    %4 = memref.load %arg2[%c1, %c0_3] : memref<4x9xf32, #tpu.memory_space<smem>>
    %5 = vector.broadcast %4 : f32 to vector<1x128xf32>
    %6 = arith.mulf %5, %0 : vector<1x128xf32>
    %c2 = arith.constant 2 : index
    %c0_4 = arith.constant 0 : index
    %7 = memref.load %arg2[%c2, %c0_4] : memref<4x9xf32, #tpu.memory_space<smem>>
    %8 = vector.broadcast %7 : f32 to vector<1x128xf32>
    %9 = arith.mulf %8, %0 : vector<1x128xf32>
    %c3 = arith.constant 3 : index
    %c0_5 = arith.constant 0 : index
    %10 = memref.load %arg2[%c3, %c0_5] : memref<4x9xf32, #tpu.memory_space<smem>>
    %11 = vector.broadcast %10 : f32 to vector<1x128xf32>
    %12 = arith.mulf %11, %0 : vector<1x128xf32>
    %c1_6 = arith.constant 1 : index
    %c0_7 = arith.constant 0 : index
    %13 = vector.load %arg1[%c1_6, %c0_7] : memref<9x128xf32, #tpu.memory_space<vmem>>, vector<1x128xf32>
    %c0_8 = arith.constant 0 : index
    %c1_9 = arith.constant 1 : index
    %14 = memref.load %arg2[%c0_8, %c1_9] : memref<4x9xf32, #tpu.memory_space<smem>>
    %15 = vector.broadcast %14 : f32 to vector<1x128xf32>
    %16 = arith.mulf %15, %13 : vector<1x128xf32>
    %17 = arith.addf %3, %16 : vector<1x128xf32>
    %c1_10 = arith.constant 1 : index
    %c1_11 = arith.constant 1 : index
    %18 = memref.load %arg2[%c1_10, %c1_11] : memref<4x9xf32, #tpu.memory_space<smem>>
    %19 = vector.broadcast %18 : f32 to vector<1x128xf32>
    %20 = arith.mulf %19, %13 : vector<1x128xf32>
    %21 = arith.addf %6, %20 : vector<1x128xf32>
    %c2_12 = arith.constant 2 : index
    %c1_13 = arith.constant 1 : index
    %22 = memref.load %arg2[%c2_12, %c1_13] : memref<4x9xf32, #tpu.memory_space<smem>>
    %23 = vector.broadcast %22 : f32 to vector<1x128xf32>
    %24 = arith.mulf %23, %13 : vector<1x128xf32>
    %25 = arith.addf %9, %24 : vector<1x128xf32>
    %c3_14 = arith.constant 3 : index
    %c1_15 = arith.constant 1 : index
    %26 = memref.load %arg2[%c3_14, %c1_15] : memref<4x9xf32, #tpu.memory_space<smem>>
    %27 = vector.broadcast %26 : f32 to vector<1x128xf32>
    %28 = arith.mulf %27, %13 : vector<1x128xf32>
    %29 = arith.addf %12, %28 : vector<1x128xf32>
    %c2_16 = arith.constant 2 : index
    %c0_17 = arith.constant 0 : index
    %30 = vector.load %arg1[%c2_16, %c0_17] : memref<9x128xf32, #tpu.memory_space<vmem>>, vector<1x128xf32>
    %c0_18 = arith.constant 0 : index
    %c2_19 = arith.constant 2 : index
    %31 = memref.load %arg2[%c0_18, %c2_19] : memref<4x9xf32, #tpu.memory_space<smem>>
    %32 = vector.broadcast %31 : f32 to vector<1x128xf32>
    %33 = arith.mulf %32, %30 : vector<1x128xf32>
    %34 = arith.addf %17, %33 : vector<1x128xf32>
    %c1_20 = arith.constant 1 : index
    %c2_21 = arith.constant 2 : index
    %35 = memref.load %arg2[%c1_20, %c2_21] : memref<4x9xf32, #tpu.memory_space<smem>>
    %36 = vector.broadcast %35 : f32 to vector<1x128xf32>
    %37 = arith.mulf %36, %30 : vector<1x128xf32>
    %38 = arith.addf %21, %37 : vector<1x128xf32>
    %c2_22 = arith.constant 2 : index
    %c2_23 = arith.constant 2 : index
    %39 = memref.load %arg2[%c2_22, %c2_23] : memref<4x9xf32, #tpu.memory_space<smem>>
    %40 = vector.broadcast %39 : f32 to vector<1x128xf32>
    %41 = arith.mulf %40, %30 : vector<1x128xf32>
    %42 = arith.addf %25, %41 : vector<1x128xf32>
    %c3_24 = arith.constant 3 : index
    %c2_25 = arith.constant 2 : index
    %43 = memref.load %arg2[%c3_24, %c2_25] : memref<4x9xf32, #tpu.memory_space<smem>>
    %44 = vector.broadcast %43 : f32 to vector<1x128xf32>
    %45 = arith.mulf %44, %30 : vector<1x128xf32>
    %46 = arith.addf %29, %45 : vector<1x128xf32>
    %c3_26 = arith.constant 3 : index
    %c0_27 = arith.constant 0 : index
    %47 = vector.load %arg1[%c3_26, %c0_27] : memref<9x128xf32, #tpu.memory_space<vmem>>, vector<1x128xf32>
    %c0_28 = arith.constant 0 : index
    %c3_29 = arith.constant 3 : index
    %48 = memref.load %arg2[%c0_28, %c3_29] : memref<4x9xf32, #tpu.memory_space<smem>>
    %49 = vector.broadcast %48 : f32 to vector<1x128xf32>
    %50 = arith.mulf %49, %47 : vector<1x128xf32>
    %51 = arith.addf %34, %50 : vector<1x128xf32>
    %c1_30 = arith.constant 1 : index
    %c3_31 = arith.constant 3 : index
    %52 = memref.load %arg2[%c1_30, %c3_31] : memref<4x9xf32, #tpu.memory_space<smem>>
    %53 = vector.broadcast %52 : f32 to vector<1x128xf32>
    %54 = arith.mulf %53, %47 : vector<1x128xf32>
    %55 = arith.addf %38, %54 : vector<1x128xf32>
    %c2_32 = arith.constant 2 : index
    %c3_33 = arith.constant 3 : index
    %56 = memref.load %arg2[%c2_32, %c3_33] : memref<4x9xf32, #tpu.memory_space<smem>>
    %57 = vector.broadcast %56 : f32 to vector<1x128xf32>
    %58 = arith.mulf %57, %47 : vector<1x128xf32>
    %59 = arith.addf %42, %58 : vector<1x128xf32>
    %c3_34 = arith.constant 3 : index
    %c3_35 = arith.constant 3 : index
    %60 = memref.load %arg2[%c3_34, %c3_35] : memref<4x9xf32, #tpu.memory_space<smem>>
    %61 = vector.broadcast %60 : f32 to vector<1x128xf32>
    %62 = arith.mulf %61, %47 : vector<1x128xf32>
    %63 = arith.addf %46, %62 : vector<1x128xf32>
    %c4 = arith.constant 4 : index
    %c0_36 = arith.constant 0 : index
    %64 = vector.load %arg1[%c4, %c0_36] : memref<9x128xf32, #tpu.memory_space<vmem>>, vector<1x128xf32>
    %c0_37 = arith.constant 0 : index
    %c4_38 = arith.constant 4 : index
    %65 = memref.load %arg2[%c0_37, %c4_38] : memref<4x9xf32, #tpu.memory_space<smem>>
    %66 = vector.broadcast %65 : f32 to vector<1x128xf32>
    %67 = arith.mulf %66, %64 : vector<1x128xf32>
    %68 = arith.addf %51, %67 : vector<1x128xf32>
    %c1_39 = arith.constant 1 : index
    %c4_40 = arith.constant 4 : index
    %69 = memref.load %arg2[%c1_39, %c4_40] : memref<4x9xf32, #tpu.memory_space<smem>>
    %70 = vector.broadcast %69 : f32 to vector<1x128xf32>
    %71 = arith.mulf %70, %64 : vector<1x128xf32>
    %72 = arith.addf %55, %71 : vector<1x128xf32>
    %c2_41 = arith.constant 2 : index
    %c4_42 = arith.constant 4 : index
    %73 = memref.load %arg2[%c2_41, %c4_42] : memref<4x9xf32, #tpu.memory_space<smem>>
    %74 = vector.broadcast %73 : f32 to vector<1x128xf32>
    %75 = arith.mulf %74, %64 : vector<1x128xf32>
    %76 = arith.addf %59, %75 : vector<1x128xf32>
    %c3_43 = arith.constant 3 : index
    %c4_44 = arith.constant 4 : index
    %77 = memref.load %arg2[%c3_43, %c4_44] : memref<4x9xf32, #tpu.memory_space<smem>>
    %78 = vector.broadcast %77 : f32 to vector<1x128xf32>
    %79 = arith.mulf %78, %64 : vector<1x128xf32>
    %80 = arith.addf %63, %79 : vector<1x128xf32>
    %c5 = arith.constant 5 : index
    %c0_45 = arith.constant 0 : index
    %81 = vector.load %arg1[%c5, %c0_45] : memref<9x128xf32, #tpu.memory_space<vmem>>, vector<1x128xf32>
    %c0_46 = arith.constant 0 : index
    %c5_47 = arith.constant 5 : index
    %82 = memref.load %arg2[%c0_46, %c5_47] : memref<4x9xf32, #tpu.memory_space<smem>>
    %83 = vector.broadcast %82 : f32 to vector<1x128xf32>
    %84 = arith.mulf %83, %81 : vector<1x128xf32>
    %85 = arith.addf %68, %84 : vector<1x128xf32>
    %c1_48 = arith.constant 1 : index
    %c5_49 = arith.constant 5 : index
    %86 = memref.load %arg2[%c1_48, %c5_49] : memref<4x9xf32, #tpu.memory_space<smem>>
    %87 = vector.broadcast %86 : f32 to vector<1x128xf32>
    %88 = arith.mulf %87, %81 : vector<1x128xf32>
    %89 = arith.addf %72, %88 : vector<1x128xf32>
    %c2_50 = arith.constant 2 : index
    %c5_51 = arith.constant 5 : index
    %90 = memref.load %arg2[%c2_50, %c5_51] : memref<4x9xf32, #tpu.memory_space<smem>>
    %91 = vector.broadcast %90 : f32 to vector<1x128xf32>
    %92 = arith.mulf %91, %81 : vector<1x128xf32>
    %93 = arith.addf %76, %92 : vector<1x128xf32>
    %c3_52 = arith.constant 3 : index
    %c5_53 = arith.constant 5 : index
    %94 = memref.load %arg2[%c3_52, %c5_53] : memref<4x9xf32, #tpu.memory_space<smem>>
    %95 = vector.broadcast %94 : f32 to vector<1x128xf32>
    %96 = arith.mulf %95, %81 : vector<1x128xf32>
    %97 = arith.addf %80, %96 : vector<1x128xf32>
    %c6 = arith.constant 6 : index
    %c0_54 = arith.constant 0 : index
    %98 = vector.load %arg1[%c6, %c0_54] : memref<9x128xf32, #tpu.memory_space<vmem>>, vector<1x128xf32>
    %c0_55 = arith.constant 0 : index
    %c6_56 = arith.constant 6 : index
    %99 = memref.load %arg2[%c0_55, %c6_56] : memref<4x9xf32, #tpu.memory_space<smem>>
    %100 = vector.broadcast %99 : f32 to vector<1x128xf32>
    %101 = arith.mulf %100, %98 : vector<1x128xf32>
    %102 = arith.addf %85, %101 : vector<1x128xf32>
    %c1_57 = arith.constant 1 : index
    %c6_58 = arith.constant 6 : index
    %103 = memref.load %arg2[%c1_57, %c6_58] : memref<4x9xf32, #tpu.memory_space<smem>>
    %104 = vector.broadcast %103 : f32 to vector<1x128xf32>
    %105 = arith.mulf %104, %98 : vector<1x128xf32>
    %106 = arith.addf %89, %105 : vector<1x128xf32>
    %c2_59 = arith.constant 2 : index
    %c6_60 = arith.constant 6 : index
    %107 = memref.load %arg2[%c2_59, %c6_60] : memref<4x9xf32, #tpu.memory_space<smem>>
    %108 = vector.broadcast %107 : f32 to vector<1x128xf32>
    %109 = arith.mulf %108, %98 : vector<1x128xf32>
    %110 = arith.addf %93, %109 : vector<1x128xf32>
    %c3_61 = arith.constant 3 : index
    %c6_62 = arith.constant 6 : index
    %111 = memref.load %arg2[%c3_61, %c6_62] : memref<4x9xf32, #tpu.memory_space<smem>>
    %112 = vector.broadcast %111 : f32 to vector<1x128xf32>
    %113 = arith.mulf %112, %98 : vector<1x128xf32>
    %114 = arith.addf %97, %113 : vector<1x128xf32>
    %c7 = arith.constant 7 : index
    %c0_63 = arith.constant 0 : index
    %115 = vector.load %arg1[%c7, %c0_63] : memref<9x128xf32, #tpu.memory_space<vmem>>, vector<1x128xf32>
    %c0_64 = arith.constant 0 : index
    %c7_65 = arith.constant 7 : index
    %116 = memref.load %arg2[%c0_64, %c7_65] : memref<4x9xf32, #tpu.memory_space<smem>>
    %117 = vector.broadcast %116 : f32 to vector<1x128xf32>
    %118 = arith.mulf %117, %115 : vector<1x128xf32>
    %119 = arith.addf %102, %118 : vector<1x128xf32>
    %c1_66 = arith.constant 1 : index
    %c7_67 = arith.constant 7 : index
    %120 = memref.load %arg2[%c1_66, %c7_67] : memref<4x9xf32, #tpu.memory_space<smem>>
    %121 = vector.broadcast %120 : f32 to vector<1x128xf32>
    %122 = arith.mulf %121, %115 : vector<1x128xf32>
    %123 = arith.addf %106, %122 : vector<1x128xf32>
    %c2_68 = arith.constant 2 : index
    %c7_69 = arith.constant 7 : index
    %124 = memref.load %arg2[%c2_68, %c7_69] : memref<4x9xf32, #tpu.memory_space<smem>>
    %125 = vector.broadcast %124 : f32 to vector<1x128xf32>
    %126 = arith.mulf %125, %115 : vector<1x128xf32>
    %127 = arith.addf %110, %126 : vector<1x128xf32>
    %c3_70 = arith.constant 3 : index
    %c7_71 = arith.constant 7 : index
    %128 = memref.load %arg2[%c3_70, %c7_71] : memref<4x9xf32, #tpu.memory_space<smem>>
    %129 = vector.broadcast %128 : f32 to vector<1x128xf32>
    %130 = arith.mulf %129, %115 : vector<1x128xf32>
    %131 = arith.addf %114, %130 : vector<1x128xf32>
    %c8 = arith.constant 8 : index
    %c0_72 = arith.constant 0 : index
    %132 = vector.load %arg1[%c8, %c0_72] : memref<9x128xf32, #tpu.memory_space<vmem>>, vector<1x128xf32>
    %c0_73 = arith.constant 0 : index
    %c8_74 = arith.constant 8 : index
    %133 = memref.load %arg2[%c0_73, %c8_74] : memref<4x9xf32, #tpu.memory_space<smem>>
    %134 = vector.broadcast %133 : f32 to vector<1x128xf32>
    %135 = arith.mulf %134, %132 : vector<1x128xf32>
    %136 = arith.addf %119, %135 : vector<1x128xf32>
    %c1_75 = arith.constant 1 : index
    %c8_76 = arith.constant 8 : index
    %137 = memref.load %arg2[%c1_75, %c8_76] : memref<4x9xf32, #tpu.memory_space<smem>>
    %138 = vector.broadcast %137 : f32 to vector<1x128xf32>
    %139 = arith.mulf %138, %132 : vector<1x128xf32>
    %140 = arith.addf %123, %139 : vector<1x128xf32>
    %c2_77 = arith.constant 2 : index
    %c8_78 = arith.constant 8 : index
    %141 = memref.load %arg2[%c2_77, %c8_78] : memref<4x9xf32, #tpu.memory_space<smem>>
    %142 = vector.broadcast %141 : f32 to vector<1x128xf32>
    %143 = arith.mulf %142, %132 : vector<1x128xf32>
    %144 = arith.addf %127, %143 : vector<1x128xf32>
    %c3_79 = arith.constant 3 : index
    %c8_80 = arith.constant 8 : index
    %145 = memref.load %arg2[%c3_79, %c8_80] : memref<4x9xf32, #tpu.memory_space<smem>>
    %146 = vector.broadcast %145 : f32 to vector<1x128xf32>
    %147 = arith.mulf %146, %132 : vector<1x128xf32>
    %148 = arith.addf %131, %147 : vector<1x128xf32>
    %c0_81 = arith.constant 0 : index
    %149 = memref.load %arg3[%c0_81] : memref<4xf32, #tpu.memory_space<smem>>
    %150 = vector.broadcast %149 : f32 to vector<1x128xf32>
    %151 = arith.addf %136, %150 : vector<1x128xf32>
    %cst = arith.constant 0.000000e+00 : f32
    %152 = vector.broadcast %cst : f32 to vector<1x128xf32>
    %153 = arith.maximumf %151, %152 : vector<1x128xf32>
    %c1_82 = arith.constant 1 : index
    %154 = memref.load %arg3[%c1_82] : memref<4xf32, #tpu.memory_space<smem>>
    %155 = vector.broadcast %154 : f32 to vector<1x128xf32>
    %156 = arith.addf %140, %155 : vector<1x128xf32>
    %cst_83 = arith.constant 0.000000e+00 : f32
    %157 = vector.broadcast %cst_83 : f32 to vector<1x128xf32>
    %158 = arith.maximumf %156, %157 : vector<1x128xf32>
    %c2_84 = arith.constant 2 : index
    %159 = memref.load %arg3[%c2_84] : memref<4xf32, #tpu.memory_space<smem>>
    %160 = vector.broadcast %159 : f32 to vector<1x128xf32>
    %161 = arith.addf %144, %160 : vector<1x128xf32>
    %cst_85 = arith.constant 0.000000e+00 : f32
    %162 = vector.broadcast %cst_85 : f32 to vector<1x128xf32>
    %163 = arith.maximumf %161, %162 : vector<1x128xf32>
    %c3_86 = arith.constant 3 : index
    %164 = memref.load %arg3[%c3_86] : memref<4xf32, #tpu.memory_space<smem>>
    %165 = vector.broadcast %164 : f32 to vector<1x128xf32>
    %166 = arith.addf %148, %165 : vector<1x128xf32>
    %cst_87 = arith.constant 0.000000e+00 : f32
    %167 = vector.broadcast %cst_87 : f32 to vector<1x128xf32>
    %168 = arith.maximumf %166, %167 : vector<1x128xf32>
    %c0_88 = arith.constant 0 : index
    %c0_89 = arith.constant 0 : index
    %169 = memref.load %arg4[%c0_88, %c0_89] : memref<2x4xf32, #tpu.memory_space<smem>>
    %170 = vector.broadcast %169 : f32 to vector<1x128xf32>
    %171 = arith.mulf %170, %153 : vector<1x128xf32>
    %c0_90 = arith.constant 0 : index
    %c1_91 = arith.constant 1 : index
    %172 = memref.load %arg4[%c0_90, %c1_91] : memref<2x4xf32, #tpu.memory_space<smem>>
    %173 = vector.broadcast %172 : f32 to vector<1x128xf32>
    %174 = arith.mulf %173, %158 : vector<1x128xf32>
    %175 = arith.addf %171, %174 : vector<1x128xf32>
    %c0_92 = arith.constant 0 : index
    %c2_93 = arith.constant 2 : index
    %176 = memref.load %arg4[%c0_92, %c2_93] : memref<2x4xf32, #tpu.memory_space<smem>>
    %177 = vector.broadcast %176 : f32 to vector<1x128xf32>
    %178 = arith.mulf %177, %163 : vector<1x128xf32>
    %179 = arith.addf %175, %178 : vector<1x128xf32>
    %c0_94 = arith.constant 0 : index
    %c3_95 = arith.constant 3 : index
    %180 = memref.load %arg4[%c0_94, %c3_95] : memref<2x4xf32, #tpu.memory_space<smem>>
    %181 = vector.broadcast %180 : f32 to vector<1x128xf32>
    %182 = arith.mulf %181, %168 : vector<1x128xf32>
    %183 = arith.addf %179, %182 : vector<1x128xf32>
    %c0_96 = arith.constant 0 : index
    %184 = memref.load %arg5[%c0_96] : memref<2xf32, #tpu.memory_space<smem>>
    %185 = vector.broadcast %184 : f32 to vector<1x128xf32>
    %186 = arith.addf %183, %185 : vector<1x128xf32>
    %c1_97 = arith.constant 1 : index
    %c0_98 = arith.constant 0 : index
    %187 = memref.load %arg4[%c1_97, %c0_98] : memref<2x4xf32, #tpu.memory_space<smem>>
    %188 = vector.broadcast %187 : f32 to vector<1x128xf32>
    %189 = arith.mulf %188, %153 : vector<1x128xf32>
    %c1_99 = arith.constant 1 : index
    %c1_100 = arith.constant 1 : index
    %190 = memref.load %arg4[%c1_99, %c1_100] : memref<2x4xf32, #tpu.memory_space<smem>>
    %191 = vector.broadcast %190 : f32 to vector<1x128xf32>
    %192 = arith.mulf %191, %158 : vector<1x128xf32>
    %193 = arith.addf %189, %192 : vector<1x128xf32>
    %c1_101 = arith.constant 1 : index
    %c2_102 = arith.constant 2 : index
    %194 = memref.load %arg4[%c1_101, %c2_102] : memref<2x4xf32, #tpu.memory_space<smem>>
    %195 = vector.broadcast %194 : f32 to vector<1x128xf32>
    %196 = arith.mulf %195, %163 : vector<1x128xf32>
    %197 = arith.addf %193, %196 : vector<1x128xf32>
    %c1_103 = arith.constant 1 : index
    %c3_104 = arith.constant 3 : index
    %198 = memref.load %arg4[%c1_103, %c3_104] : memref<2x4xf32, #tpu.memory_space<smem>>
    %199 = vector.broadcast %198 : f32 to vector<1x128xf32>
    %200 = arith.mulf %199, %168 : vector<1x128xf32>
    %201 = arith.addf %197, %200 : vector<1x128xf32>
    %c1_105 = arith.constant 1 : index
    %202 = memref.load %arg5[%c1_105] : memref<2xf32, #tpu.memory_space<smem>>
    %203 = vector.broadcast %202 : f32 to vector<1x128xf32>
    %204 = arith.addf %201, %203 : vector<1x128xf32>
    %205 = arith.subf %204, %186 : vector<1x128xf32>
    %cst_106 = arith.constant 0.000000e+00 : f32
    %206 = vector.broadcast %cst_106 : f32 to vector<1x128xf32>
    %207 = arith.subf %206, %205 : vector<1x128xf32>
    %208 = math.exp %207 : vector<1x128xf32>
    %cst_107 = arith.constant 1.000000e+00 : f32
    %209 = vector.broadcast %cst_107 : f32 to vector<1x128xf32>
    %210 = arith.addf %209, %208 : vector<1x128xf32>
    %cst_108 = arith.constant 1.000000e+00 : f32
    %211 = vector.broadcast %cst_108 : f32 to vector<1x128xf32>
    %212 = arith.divf %211, %210 : vector<1x128xf32>
    %cst_109 = arith.constant 1.000000e+00 : f32
    %213 = vector.broadcast %cst_109 : f32 to vector<1x128xf32>
    %214 = arith.subf %213, %212 : vector<1x128xf32>
    %215 = tpu.concatenate %214, %212 in 0 : vector<1x128xf32>, vector<1x128xf32> -> vector<2x128xf32>
    %c0_110 = arith.constant 0 : index
    %c0_111 = arith.constant 0 : index
    %216 = vector.load %arg6[%c0_110, %c0_111] : memref<2x128xf32, #tpu.memory_space<vmem>>, vector<2x128xf32>
    tpu.vector_store %arg6[%c0_110, %c0_111], %215 {strides = array<i32>} : memref<2x128xf32, #tpu.memory_space<vmem>>, vector<2x128xf32>,
    return
  }
  func.func @transform_0(%arg0: i32) -> (i32, i32) {
    %c0_i32 = arith.constant 0 : i32
    %c0_i32_0 = arith.constant 0 : i32
    return %c0_i32, %arg0 : i32, i32
  }
  func.func @transform_1(%arg0: i32) -> (i32, i32) {
    %c0_i32 = arith.constant 0 : i32
    %c0_i32_0 = arith.constant 0 : i32
    %c0_i32_1 = arith.constant 0 : i32
    return %c0_i32, %c0_i32_0 : i32, i32
  }
  func.func @transform_2(%arg0: i32) -> i32 {
    %c0_i32 = arith.constant 0 : i32
    %c0_i32_0 = arith.constant 0 : i32
    return %c0_i32 : i32
  }
  func.func @transform_3(%arg0: i32) -> (i32, i32) {
    %c0_i32 = arith.constant 0 : i32
    %c0_i32_0 = arith.constant 0 : i32
    %c0_i32_1 = arith.constant 0 : i32
    return %c0_i32, %c0_i32_0 : i32, i32
  }
  func.func @transform_4(%arg0: i32) -> i32 {
    %c0_i32 = arith.constant 0 : i32
    %c0_i32_0 = arith.constant 0 : i32
    return %c0_i32 : i32
  }
  func.func @transform_5(%arg0: i32) -> (i32, i32) {
    %c0_i32 = arith.constant 0 : i32
    %c0_i32_0 = arith.constant 0 : i32
    return %c0_i32, %arg0 : i32, i32
  }
}

</mosaic_0001>

<llo_original>
// kernel: classify_forward.1
$region0: #{classify_forward.1}
  #allocation0 [shape = 'u32[]', space=smem, size = 0x4, offset = 0x4, fixed_abs, tag = 'smem constant byte address 0x4 - core index']
  #allocation1 [shape = 'u32[144,128]{1,0:T(1,128)}', space=vmem, size = 0x12000, scoped, tag = 'internal scratch']
  %s0 = inlined_call_operand.vmem [shape: f32[9,128], index: 0, kind: input, shape index: {}]
  %s1 = inlined_call_operand.vmem [shape: f32[4,9], index: 1, kind: input, shape index: {}]
  %s2 = inlined_call_operand.vmem [shape: f32[4], index: 2, kind: input, shape index: {}]
  %s3 = inlined_call_operand.vmem [shape: f32[2,4], index: 3, kind: input, shape index: {}]
  %s4 = inlined_call_operand.vmem [shape: f32[2], index: 4, kind: input, shape index: {}]
  %s5 = inlined_call_operand.hbm [shape: f32[2,128], index: 5, kind: output, shape index: {}]
  %s6 = sld [smem:[#allocation0]]
  $region46: #{classify_forward.1} parent=0
    _
  %s8 = ssub.s32 1, %s6
  %s9 = scalar_select 0, %s8, %s6
  $region1: #{classify_forward.1} parent=0
    #allocation2 [shape = 'u8[2048]{0}', space=smem, size = 0x800, scoped, tag = 'input window, operand 1, single buffered']
    #allocation3 [shape = 's32[1]{0}', space=sflag, size = 0x4, scoped, tag = 'scoped memory for classify_forward.1']
    #allocation4 [shape = 's32[1]{0}', space=sflag, size = 0x4, scoped, tag = 'scoped memory for classify_forward.1']
    #allocation5 [shape = 'u8[512]{0}', space=smem, size = 0x200, scoped, tag = 'input window, operand 2, single buffered']
    #allocation6 [shape = 's32[1]{0}', space=sflag, size = 0x4, scoped, tag = 'scoped memory for classify_forward.1']
    #allocation7 [shape = 'u8[1024]{0}', space=smem, size = 0x400, scoped, tag = 'input window, operand 3, single buffered']
    #allocation8 [shape = 'u8[512]{0}', space=smem, size = 0x200, scoped, tag = 'input window, operand 4, single buffered']
    #allocation9 [shape = 's32[1]{0}', space=sflag, size = 0x4, scoped, tag = 'scoped memory for classify_forward.1']
    #allocation10 [shape = 'u8[1024]{0}', space=vmem, size = 0x400, scoped, tag = 'output window, operand 0, single buffered']
    %10 = vsyncpa [#allocation4], 0
    %11 = vsyncpa [#allocation6], 0
    %12 = vsyncpa [#allocation9], 0
    %13 = vsyncpa [#allocation3], 0
    // Predicated region
    $region2: #{classify_forward.1} parent=1 // pred_check
      _
    $region3: #{classify_forward.1} parent=1 // pred_check_branch
      %15 = sbr.rel (0) target = $region5
    $region4: #{classify_forward.1} parent=1 // pred_region
      _
    $region5: #{classify_forward.1} parent=1 // pred_fallthru
      _
    // Predicated region
    $region6: #{classify_forward.1} parent=1 // pred_check
      _
    $region7: #{classify_forward.1} parent=1 // pred_check_branch
      %17 = sbr.rel (0) target = $region9
    $region8: #{classify_forward.1} parent=1 // pred_region
      %s19 = ssub.s32 64, 64
      %20 = vsyncadd [#allocation4], %s19
      %s22 = sshll.u32 %s1, 4
      %s23 = int_to_ptr.vmem [resolvable:$true] %s22
      %25 = dma.vmem_to_smem %s23, 64, [#allocation2], [#allocation4]
    $region9: #{classify_forward.1} parent=1 // pred_fallthru
      _
    // Predicated region
    $region10: #{classify_forward.1} parent=1 // pred_check
      _
    $region11: #{classify_forward.1} parent=1 // pred_check_branch
      %27 = sbr.rel (0) target = $region13
    $region12: #{classify_forward.1} parent=1 // pred_region
      %s29 = ssub.s32 16, 16
      %30 = vsyncadd [#allocation6], %s29
      %s32 = sshll.u32 %s2, 4
      %s33 = int_to_ptr.vmem [resolvable:$true] %s32
      %35 = dma.vmem_to_smem %s33, 16, [#allocation5], [#allocation6]
    $region13: #{classify_forward.1} parent=1 // pred_fallthru
      _
    // Predicated region
    $region14: #{classify_forward.1} parent=1 // pred_check
      _
    $region15: #{classify_forward.1} parent=1 // pred_check_branch
      %37 = sbr.rel (0) target = $region17
    $region16: #{classify_forward.1} parent=1 // pred_region
      %s39 = ssub.s32 32, 32
      %40 = vsyncadd [#allocation6], %s39
      %s42 = sshll.u32 %s3, 4
      %s43 = int_to_ptr.vmem [resolvable:$true] %s42
      %45 = dma.vmem_to_smem %s43, 32, [#allocation7], [#allocation6]
    $region17: #{classify_forward.1} parent=1 // pred_fallthru
      _
    // Predicated region
    $region18: #{classify_forward.1} parent=1 // pred_check
      _
    $region19: #{classify_forward.1} parent=1 // pred_check_branch
      %47 = sbr.rel (0) target = $region21
    $region20: #{classify_forward.1} parent=1 // pred_region
      %s49 = ssub.s32 16, 16
      %50 = vsyncadd [#allocation9], %s49
      %s52 = sshll.u32 %s4, 4
      %s53 = int_to_ptr.vmem [resolvable:$true] %s52
      %55 = dma.vmem_to_smem %s53, 16, [#allocation8], [#allocation9]
    $region21: #{classify_forward.1} parent=1 // pred_fallthru
      _
    // Predicated region
    $region22: #{classify_forward.1} parent=1 // pred_check
      _
    $region23: #{classify_forward.1} parent=1 // pred_check_branch
      %57 = sbr.rel (0) target = $region25
    $region24: #{classify_forward.1} parent=1 // pred_region
      %58 = dma.done [#allocation4], 64
    $region25: #{classify_forward.1} parent=1 // pred_fallthru
      _
    // Predicated region
    $region26: #{classify_forward.1} parent=1 // pred_check
      _
    $region27: #{classify_forward.1} parent=1 // pred_check_branch
      %60 = sbr.rel (0) target = $region29
    $region28: #{classify_forward.1} parent=1 // pred_region
      %61 = dma.done [#allocation6], 16
    $region29: #{classify_forward.1} parent=1 // pred_fallthru
      _
    // Predicated region
    $region30: #{classify_forward.1} parent=1 // pred_check
      _
    $region31: #{classify_forward.1} parent=1 // pred_check_branch
      %63 = sbr.rel (0) target = $region33
    $region32: #{classify_forward.1} parent=1 // pred_region
      %64 = dma.done [#allocation6], 32
    $region33: #{classify_forward.1} parent=1 // pred_fallthru
      _
    // Predicated region
    $region34: #{classify_forward.1} parent=1 // pred_check
      _
    $region35: #{classify_forward.1} parent=1 // pred_check_branch
      %66 = sbr.rel (0) target = $region37
    $region36: #{classify_forward.1} parent=1 // pred_region
      %67 = dma.done [#allocation9], 16
    $region37: #{classify_forward.1} parent=1 // pred_fallthru
      _
    %68 = sfence
    %v69 = vld [vmem:[%s0] sm:$0x1]
    %s70 = sld [smem:[#allocation2]]
    %v71 = vstv %s70
    %v72 = vmul.f32 %v71, %v69
    %s73 = sld [smem:[#allocation2 + $0x80]]
    %v74 = vstv %s73
    %v75 = vmul.f32 %v74, %v69
    %s76 = sld [smem:[#allocation2 + $0x100]]
    %v77 = vstv %s76
    %v78 = vmul.f32 %v77, %v69
    %s79 = sld [smem:[#allocation2 + $0x180]]
    %v80 = vstv %s79
    %v81 = vmul.f32 %v80, %v69
    %v82 = vld [vmem:[%s0 + $0x1] sm:$0x1]
    %s83 = sld [smem:[#allocation2 + $0x1]]
    %v84 = vstv %s83
    %v85 = vmul.f32 %v84, %v82
    %v86 = vadd.f32 %v72, %v85
    %s87 = sld [smem:[#allocation2 + $0x81]]
    %v88 = vstv %s87
    %v89 = vmul.f32 %v88, %v82
    %v90 = vadd.f32 %v75, %v89
    %s91 = sld [smem:[#allocation2 + $0x101]]
    %v92 = vstv %s91
    %v93 = vmul.f32 %v92, %v82
    %v94 = vadd.f32 %v78, %v93
    %s95 = sld [smem:[#allocation2 + $0x181]]
    %v96 = vstv %s95
    %v97 = vmul.f32 %v96, %v82
    %v98 = vadd.f32 %v81, %v97
    %v99 = vld [vmem:[%s0 + $0x2] sm:$0x1]
    %s100 = sld [smem:[#allocation2 + $0x2]]
    %v101 = vstv %s100
    %v102 = vmul.f32 %v101, %v99
    %v103 = vadd.f32 %v86, %v102
    %s104 = sld [smem:[#allocation2 + $0x82]]
    %v105 = vstv %s104
    %v106 = vmul.f32 %v105, %v99
    %v107 = vadd.f32 %v90, %v106
    %s108 = sld [smem:[#allocation2 + $0x102]]
    %v109 = vstv %s108
    %v110 = vmul.f32 %v109, %v99
    %v111 = vadd.f32 %v94, %v110
    %s112 = sld [smem:[#allocation2 + $0x182]]
    %v113 = vstv %s112
    %v114 = vmul.f32 %v113, %v99
    %v115 = vadd.f32 %v98, %v114
    %v116 = vld [vmem:[%s0 + $0x3] sm:$0x1]
    %s117 = sld [smem:[#allocation2 + $0x3]]
    %v118 = vstv %s117
    %v119 = vmul.f32 %v118, %v116
    %v120 = vadd.f32 %v103, %v119
    %s121 = sld [smem:[#allocation2 + $0x83]]
    %v122 = vstv %s121
    %v123 = vmul.f32 %v122, %v116
    %v124 = vadd.f32 %v107, %v123
    %s125 = sld [smem:[#allocation2 + $0x103]]
    %v126 = vstv %s125
    %v127 = vmul.f32 %v126, %v116
    %v128 = vadd.f32 %v111, %v127
    %s129 = sld [smem:[#allocation2 + $0x183]]
    %v130 = vstv %s129
    %v131 = vmul.f32 %v130, %v116
    %v132 = vadd.f32 %v115, %v131
    %v133 = vld [vmem:[%s0 + $0x4] sm:$0x1]
    %s134 = sld [smem:[#allocation2 + $0x4]]
    %v135 = vstv %s134
    %v136 = vmul.f32 %v135, %v133
    %v137 = vadd.f32 %v120, %v136
    %s138 = sld [smem:[#allocation2 + $0x84]]
    %v139 = vstv %s138
    %v140 = vmul.f32 %v139, %v133
    %v141 = vadd.f32 %v124, %v140
    %s142 = sld [smem:[#allocation2 + $0x104]]
    %v143 = vstv %s142
    %v144 = vmul.f32 %v143, %v133
    %v145 = vadd.f32 %v128, %v144
    %s146 = sld [smem:[#allocation2 + $0x184]]
    %v147 = vstv %s146
    %v148 = vmul.f32 %v147, %v133
    %v149 = vadd.f32 %v132, %v148
    %v150 = vld [vmem:[%s0 + $0x5] sm:$0x1]
    %s151 = sld [smem:[#allocation2 + $0x5]]
    %v152 = vstv %s151
    %v153 = vmul.f32 %v152, %v150
    %v154 = vadd.f32 %v137, %v153
    %s155 = sld [smem:[#allocation2 + $0x85]]
    %v156 = vstv %s155
    %v157 = vmul.f32 %v156, %v150
    %v158 = vadd.f32 %v141, %v157
    %s159 = sld [smem:[#allocation2 + $0x105]]
    %v160 = vstv %s159
    %v161 = vmul.f32 %v160, %v150
    %v162 = vadd.f32 %v145, %v161
    %s163 = sld [smem:[#allocation2 + $0x185]]
    %v164 = vstv %s163
    %v165 = vmul.f32 %v164, %v150
    %v166 = vadd.f32 %v149, %v165
    %v167 = vld [vmem:[%s0 + $0x6] sm:$0x1]
    %s168 = sld [smem:[#allocation2 + $0x6]]
    %v169 = vstv %s168
    %v170 = vmul.f32 %v169, %v167
    %v171 = vadd.f32 %v154, %v170
    %s172 = sld [smem:[#allocation2 + $0x86]]
    %v173 = vstv %s172
    %v174 = vmul.f32 %v173, %v167
    %v175 = vadd.f32 %v158, %v174
    %s176 = sld [smem:[#allocation2 + $0x106]]
    %v177 = vstv %s176
    %v178 = vmul.f32 %v177, %v167
    %v179 = vadd.f32 %v162, %v178
    %s180 = sld [smem:[#allocation2 + $0x186]]
    %v181 = vstv %s180
    %v182 = vmul.f32 %v181, %v167
    %v183 = vadd.f32 %v166, %v182
    %v184 = vld [vmem:[%s0 + $0x7] sm:$0x1]
    %s185 = sld [smem:[#allocation2 + $0x7]]
    %v186 = vstv %s185
    %v187 = vmul.f32 %v186, %v184
    %v188 = vadd.f32 %v171, %v187
    %s189 = sld [smem:[#allocation2 + $0x87]]
    %v190 = vstv %s189
    %v191 = vmul.f32 %v190, %v184
    %v192 = vadd.f32 %v175, %v191
    %s193 = sld [smem:[#allocation2 + $0x107]]
    %v194 = vstv %s193
    %v195 = vmul.f32 %v194, %v184
    %v196 = vadd.f32 %v179, %v195
    %s197 = sld [smem:[#allocation2 + $0x187]]
    %v198 = vstv %s197
    %v199 = vmul.f32 %v198, %v184
    %v200 = vadd.f32 %v183, %v199
    %v201 = vld [vmem:[%s0 + $0x8] sm:$0x1]
    %s202 = sld [smem:[#allocation2 + $0x8]]
    %v203 = vstv %s202
    %v204 = vmul.f32 %v203, %v201
    %v205 = vadd.f32 %v188, %v204
    %s206 = sld [smem:[#allocation2 + $0x88]]
    %v207 = vstv %s206
    %v208 = vmul.f32 %v207, %v201
    %v209 = vadd.f32 %v192, %v208
    %s210 = sld [smem:[#allocation2 + $0x108]]
    %v211 = vstv %s210
    %v212 = vmul.f32 %v211, %v201
    %v213 = vadd.f32 %v196, %v212
    %s214 = sld [smem:[#allocation2 + $0x188]]
    %v215 = vstv %s214
    %v216 = vmul.f32 %v215, %v201
    %v217 = vadd.f32 %v200, %v216
    %s218 = sld [smem:[#allocation5]]
    %v219 = vstv %s218
    %v220 = vadd.f32 %v205, %v219
    %v221 = vmax.f32 %v220, 0.0
    %s222 = sld [smem:[#allocation5 + $0x1]]
    %v223 = vstv %s222
    %v224 = vadd.f32 %v209, %v223
    %v225 = vmax.f32 %v224, 0.0
    %s226 = sld [smem:[#allocation5 + $0x2]]
    %v227 = vstv %s226
    %v228 = vadd.f32 %v213, %v227
    %v229 = vmax.f32 %v228, 0.0
    %s230 = sld [smem:[#allocation5 + $0x3]]
    %v231 = vstv %s230
    %v232 = vadd.f32 %v217, %v231
    %v233 = vmax.f32 %v232, 0.0
    %s234 = sld [smem:[#allocation7]]
    %v235 = vstv %s234
    %v236 = vmul.f32 %v235, %v221
    %s237 = sld [smem:[#allocation7 + $0x1]]
    %v238 = vstv %s237
    %v239 = vmul.f32 %v238, %v225
    %v240 = vadd.f32 %v236, %v239
    %s241 = sld [smem:[#allocation7 + $0x2]]
    %v242 = vstv %s241
    %v243 = vmul.f32 %v242, %v229
    %v244 = vadd.f32 %v240, %v243
    %s245 = sld [smem:[#allocation7 + $0x3]]
    %v246 = vstv %s245
    %v247 = vmul.f32 %v246, %v233
    %v248 = vadd.f32 %v244, %v247
    %s249 = sld [smem:[#allocation8]]
    %v250 = vstv %s249
    %v251 = vadd.f32 %v248, %v250
    %s252 = sld [smem:[#allocation7 + $0x80]]
    %v253 = vstv %s252
    %v254 = vmul.f32 %v253, %v221
    %s255 = sld [smem:[#allocation7 + $0x81]]
    %v256 = vstv %s255
    %v257 = vmul.f32 %v256, %v225
    %v258 = vadd.f32 %v254, %v257
    %s259 = sld [smem:[#allocation7 + $0x82]]
    %v260 = vstv %s259
    %v261 = vmul.f32 %v260, %v229
    %v262 = vadd.f32 %v258, %v261
    %s263 = sld [smem:[#allocation7 + $0x83]]
    %v264 = vstv %s263
    %v265 = vmul.f32 %v264, %v233
    %v266 = vadd.f32 %v262, %v265
    %s267 = sld [smem:[#allocation8 + $0x1]]
    %v268 = vstv %s267
    %v269 = vadd.f32 %v266, %v268
    %v270 = vsub.f32 %v269, %v251
    %v271 = vsub.f32 0.0, %v270
    %v272 = vmul.f32 %v271, 1.442695
    %v273 = vpow.pop %v272
    %v274 = vadd.f32 %v273, 1.0
    %v275 = vrcp.pop %v274
    %v276 = vmul.f32 1.0, %v275
    %v277 = vsub.f32 1.0, %v276
    %v279 = vrot.slane %v276, 7
    %vm281 = vcmask 1040384
    %v282 = vsel %vm281, %v277, %v279
    %283 = vst [vmem:[#allocation10] sm:$0x3] %v282
    // Predicated region
    $region38: #{classify_forward.1} parent=1 // pred_check
      _
    $region39: #{classify_forward.1} parent=1 // pred_check_branch
      %285 = sbr.rel (0) target = $region41
    $region40: #{classify_forward.1} parent=1 // pred_region
      %s287 = ssub.s32 32, 32
      %288 = vsyncadd [#allocation3], %s287
      %s290 = sshll.u32 [#allocation10], 4
      %s291 = int_to_ptr.vmem [resolvable:$true] %s290
      %293 = dma.vmem_to_hbm [thread:$0]  %s291, 32, %s5, [#allocation3]
    $region41: #{classify_forward.1} parent=1 // pred_fallthru
      _
    // Predicated region
    $region42: #{classify_forward.1} parent=1 // pred_check
      _
    $region43: #{classify_forward.1} parent=1 // pred_check_branch
      %295 = sbr.rel (0) target = $region45
    $region44: #{classify_forward.1} parent=1 // pred_region
      %296 = dma.done [#allocation3], 32
    $region45: #{classify_forward.1} parent=1 // pred_fallthru
      _
    %297 = vsyncpa [#allocation3], 1
    %298 = vsyncpa [#allocation4], 1
    %299 = vsyncpa [#allocation6], 1
    %300 = vsyncpa [#allocation9], 1

</llo_original>
